<compile_context>
chip_gen: v7x
topology: tpu7x:2x2x1
jax: 0.10.0
libtpu: 0.0.40
codegen_flags: <defaults>
</compile_context>

<pallas_src>
import functools

import jax
import jax.numpy as jnp
from jax.experimental import pallas as pl
from jax.experimental.pallas import tpu as pltpu

SELU_ALPHA = 1.6732632423543772
SELU_SCALE = 1.0507009873554805

LANE = 128
_VMEM_SAFE_BUDGET = 12 * 1024 * 1024  # under every chip's default scoped limit


def _selu(x):
    # Guard the exp argument: jnp.where evaluates both branches, so exp of large
    # positive activations would overflow in the dead branch otherwise.
    neg = SELU_ALPHA * (jnp.exp(jnp.minimum(x, 0.0)) - 1.0)
    return SELU_SCALE * jnp.where(x > 0.0, x, neg)


def _round_up(n, m):
    return ((n + m - 1) // m) * m


def _make_action_kernel(num_layers):
    """Kernel refs: (x, w0, b0, ..., w_{L-1}, b_{L-1}, mu_out)."""

    def kernel(*refs):
        x_ref = refs[0]
        mu_ref = refs[-1]
        # f32 -> bf16 cast happens in VMEM (no wrapper-side HBM pass over x).
        h = x_ref[...].astype(jnp.bfloat16)           # (TB, feat)
        for li in range(num_layers):
            w = refs[1 + 2 * li][...]                 # bf16, VMEM-resident
            b = refs[2 + 2 * li][...]                 # f32  (1, out_pad)
            h = jnp.dot(h, w, preferred_element_type=jnp.float32) + b
            if li < num_layers - 1:
                # Elementwise in f32; next matmul operand back to bf16.
                h = _selu(h).astype(jnp.bfloat16)
        # bf16, lane-dense store; std is a constant and is NOT stored here.
        mu_ref[...] = jnp.tanh(h).astype(mu_ref.dtype)

    return kernel


def _choose_block_b(batch, feat, out_pad, max_pad, resident_bytes):
    """Pick a batch tile: >=4 grid steps when possible (v7x megacore + pipelining),
    rows in multiples of 16 (bf16 packing), fitting a chip-safe VMEM budget."""

    def per_step(tb):
        return (2 * tb * feat * 4          # f32 x tile, double-buffered
                + 2 * tb * out_pad * 2     # bf16 mu tile, double-buffered
                + 12 * tb * max_pad)       # live f32+bf16 activations / temporaries

    tb = max(8, min(512,
                    _round_up(pl.cdiv(batch, 4), 16),
                    _round_up(batch, 8)))
    while tb > 8 and resident_bytes + per_step(tb) > _VMEM_SAFE_BUDGET:
        tb = max(8, _round_up(tb // 2, 8))
    return tb, resident_bytes + per_step(tb)


def prepare_params(weights, biases):
    """One-time prep (outside the per-call path): pad output feature dims to lane
    multiples (128), cast weights to bf16 (MXU-native) and biases to f32.

    The first weight's input dim is left un-padded so it contracts directly with
    the un-padded x block."""
    feat = weights[0].shape[0]
    pdims = [feat] + [_round_up(w.shape[1], LANE) for w in weights]
    w_pad, b_pad = [], []
    for li, (w, b) in enumerate(zip(weights, biases)):
        wi = jnp.pad(w, ((0, pdims[li] - w.shape[0]),
                         (0, pdims[li + 1] - w.shape[1]))).astype(jnp.bfloat16)
        bi = jnp.pad(b, ((0, 0), (0, pdims[li + 1] - b.shape[1]))).astype(jnp.float32)
        w_pad.append(wi)
        b_pad.append(bi)
    return tuple(w_pad), tuple(b_pad)


@functools.partial(jax.jit, static_argnames=("action_dim",))
def action_model_forward(x, weights, biases, *, action_dim):
    """x: (B, in_dim*2) f32.  weights/biases: output of prepare_params.

    Returns (mu, std) of the Independent(Normal(mu, 1), 1) distribution,
    both f32 of shape (B, action_dim)."""
    num_layers = len(weights)
    B, feat = x.shape
    out_pad = weights[-1].shape[1]
    max_pad = max(w.shape[1] for w in weights)

    # Resident params are double-buffered by the pipeliner (conservative).
    resident_bytes = 2 * sum(w.size * 2 + b.size * 4
                             for w, b in zip(weights, biases))
    tb, vmem_need = _choose_block_b(B, feat, out_pad, max_pad, resident_bytes)

    grid = (pl.cdiv(B, tb),)

    # x block keeps the full (un-padded) feature dim -> legal even if < 128.
    in_specs = [pl.BlockSpec((tb, feat), lambda i: (i, 0))]
    args = [x]
    for w, b in zip(weights, biases):
        # Constant index_map -> weight/bias blocks stay resident in VMEM.
        in_specs.append(pl.BlockSpec(w.shape, lambda i: (0, 0)))
        in_specs.append(pl.BlockSpec(b.shape, lambda i: (0, 0)))
        args += [w, b]

    compiler_kwargs = {}
    if vmem_need > _VMEM_SAFE_BUDGET:
        # Large configs: raise the scoped limit explicitly (clamped for v7x).
        compiler_kwargs["vmem_limit_bytes"] = int(min(vmem_need + (2 << 20), 60 << 20))

    mu_p = pl.pallas_call(
        _make_action_kernel(num_layers),
        out_shape=jax.ShapeDtypeStruct((B, out_pad), jnp.bfloat16),
        grid=grid,
        in_specs=in_specs,
        out_specs=pl.BlockSpec((tb, out_pad), lambda i: (i, 0)),
        compiler_params=pltpu.CompilerParams(
            dimension_semantics=("parallel",),   # megacore on v7x; no-op elsewhere
            **compiler_kwargs),
    )(*args)

    # Interface slice + upcast on the small result only (consumers that can use
    # the lane-padded bf16 slab may take mu_p directly and skip this pass).
    mu = mu_p[:, :action_dim].astype(jnp.float32)
    std = jnp.ones_like(mu)                      # constant; never touches the kernel
    return mu, std


def init_params(key, in_dim, action_dim, hidden_size, depth):
    """Deterministic init matching torch.nn.Linear default (uniform +-1/sqrt(fan_in)).
    Weights are stored pre-transposed as (in_features, out_features)."""
    assert depth > 2
    dims = [in_dim * 2] + [hidden_size] * depth + [action_dim]
    weights, biases = [], []
    for i in range(len(dims) - 1):
        fan_in, fan_out = dims[i], dims[i + 1]
        key, kw, kb = jax.random.split(key, 3)
        bound = 1.0 / jnp.sqrt(fan_in)
        w = jax.random.uniform(kw, (fan_in, fan_out), jnp.float32, -bound, bound)
        b = jax.random.uniform(kb, (1, fan_out), jnp.float32, -bound, bound)
        weights.append(w)
        biases.append(b)
    return weights, biases


def _reference_forward(x, weights, biases):
    """Pure-JAX reference mirroring the kernel's numerics (bf16 matmul operands,
    f32 accumulation/elementwise, bf16-quantized mu)."""
    h = x.astype(jnp.bfloat16)
    n = len(weights)
    for i, (w, b) in enumerate(zip(weights, biases)):
        h = jnp.dot(h, w.astype(jnp.bfloat16),
                    preferred_element_type=jnp.float32) + b
        if i < n - 1:
            h = _selu(h).astype(jnp.bfloat16)
    mu = jnp.tanh(h).astype(jnp.bfloat16).astype(jnp.float32)
    return mu, jnp.ones_like(mu)


if __name__ == "__main__":
    # Small shapes consistent with the module's forward.
    in_dim = 16
    action_dim = 8
    hidden_size = 32
    depth = 3
    batch = 64

    key = jax.random.PRNGKey(0)
    key, kx = jax.random.split(key)
    x = jax.random.normal(kx, (batch, in_dim * 2), jnp.float32)

    weights, biases = init_params(key, in_dim, action_dim, hidden_size, depth)
    w_pad, b_pad = prepare_params(weights, biases)   # one-time param prep

    mu, std = action_model_forward(x, w_pad, b_pad, action_dim=action_dim)
    jax.block_until_ready((mu, std))

    mu_ref, std_ref = _reference_forward(x, weights, biases)
    assert mu.shape == (batch, action_dim)
    assert std.shape == (batch, action_dim)
    assert jnp.allclose(mu, mu_ref, atol=1e-2, rtol=1e-2)
    assert jnp.allclose(std, 1.0)

    print("KERNEL_OK")
</pallas_src>

<mosaic_0001>
module attributes {stable_mosaic.version = 11 : i64} {
  func.func @kernel(%arg0: i32, %arg1: memref<16x32xf32, #tpu.memory_space<vmem>>, %arg2: memref<32x128xbf16, #tpu.memory_space<vmem>>, %arg3: memref<1x128xf32, #tpu.memory_space<vmem>>, %arg4: memref<128x128xbf16, #tpu.memory_space<vmem>>, %arg5: memref<1x128xf32, #tpu.memory_space<vmem>>, %arg6: memref<128x128xbf16, #tpu.memory_space<vmem>>, %arg7: memref<1x128xf32, #tpu.memory_space<vmem>>, %arg8: memref<128x128xbf16, #tpu.memory_space<vmem>>, %arg9: memref<1x128xf32, #tpu.memory_space<vmem>>, %arg10: memref<16x128xbf16, #tpu.memory_space<vmem>>) attributes {dimension_semantics = [#tpu.dimension_semantics<parallel>], iteration_bounds = array<i64: 4>, scalar_prefetch = 0 : i64, scratch_operands = 0 : i64, tpu.core_type = #tpu.core_type<tc>, window_params = [{transform_indices = @transform_0, window_bounds = array<i64: 16, 32>}, {pipeline_mode = #tpu.pipeline_mode<synchronous>, transform_indices = @transform_1, window_bounds = array<i64: 32, 128>}, {pipeline_mode = #tpu.pipeline_mode<synchronous>, transform_indices = @transform_2, window_bounds = array<i64: 1, 128>}, {pipeline_mode = #tpu.pipeline_mode<synchronous>, transform_indices = @transform_3, window_bounds = array<i64: 128, 128>}, {pipeline_mode = #tpu.pipeline_mode<synchronous>, transform_indices = @transform_4, window_bounds = array<i64: 1, 128>}, {pipeline_mode = #tpu.pipeline_mode<synchronous>, transform_indices = @transform_5, window_bounds = array<i64: 128, 128>}, {pipeline_mode = #tpu.pipeline_mode<synchronous>, transform_indices = @transform_6, window_bounds = array<i64: 1, 128>}, {pipeline_mode = #tpu.pipeline_mode<synchronous>, transform_indices = @transform_7, window_bounds = array<i64: 128, 128>}, {pipeline_mode = #tpu.pipeline_mode<synchronous>, transform_indices = @transform_8, window_bounds = array<i64: 1, 128>}, {transform_indices = @transform_9, window_bounds = array<i64: 16, 128>}]} {
    %c0 = arith.constant 0 : index
    %c0_0 = arith.constant 0 : index
    %0 = vector.load %arg1[%c0, %c0_0] : memref<16x32xf32, #tpu.memory_space<vmem>>, vector<16x32xf32>
    %1 = arith.truncf %0 : vector<16x32xf32> to vector<16x32xbf16>
    %c0_1 = arith.constant 0 : index
    %c0_2 = arith.constant 0 : index
    %2 = vector.load %arg2[%c0_1, %c0_2] : memref<32x128xbf16, #tpu.memory_space<vmem>>, vector<32x128xbf16>
    %c0_3 = arith.constant 0 : index
    %c0_4 = arith.constant 0 : index
    %3 = vector.load %arg3[%c0_3, %c0_4] : memref<1x128xf32, #tpu.memory_space<vmem>>, vector<1x128xf32>
    %cst = arith.constant dense<0.000000e+00> : vector<16x128xf32>
    %4 = tpu.matmul %1, %2, %cst {dimension_numbers = #tpu.dot_dimension_numbers<[1], [0], [0], [1], [0, 0, 1, 1], [], []>} : vector<16x32xbf16>, vector<32x128xbf16>, vector<16x128xf32> -> vector<16x128xf32>
    %5 = vector.broadcast %3 : vector<1x128xf32> to vector<16x128xf32>
    %6 = arith.addf %4, %5 : vector<16x128xf32>
    %cst_5 = arith.constant 0.000000e+00 : f32
    %7 = vector.broadcast %cst_5 : f32 to vector<16x128xf32>
    %8 = arith.minimumf %6, %7 : vector<16x128xf32>
    %9 = math.exp %8 : vector<16x128xf32>
    %cst_6 = arith.constant 1.000000e+00 : f32
    %10 = vector.broadcast %cst_6 : f32 to vector<16x128xf32>
    %11 = arith.subf %9, %10 : vector<16x128xf32>
    %cst_7 = arith.constant 1.67326319 : f32
    %12 = vector.broadcast %cst_7 : f32 to vector<16x128xf32>
    %13 = arith.mulf %12, %11 : vector<16x128xf32>
    %cst_8 = arith.constant 0.000000e+00 : f32
    %14 = vector.broadcast %cst_8 : f32 to vector<16x128xf32>
    %15 = arith.cmpf ogt, %6, %14 : vector<16x128xf32>
    %16 = arith.select %15, %6, %13 : vector<16x128xi1>, vector<16x128xf32>
    %cst_9 = arith.constant 1.05070102 : f32
    %17 = vector.broadcast %cst_9 : f32 to vector<16x128xf32>
    %18 = arith.mulf %17, %16 : vector<16x128xf32>
    %19 = arith.truncf %18 : vector<16x128xf32> to vector<16x128xbf16>
    %c0_10 = arith.constant 0 : index
    %c0_11 = arith.constant 0 : index
    %20 = vector.load %arg4[%c0_10, %c0_11] : memref<128x128xbf16, #tpu.memory_space<vmem>>, vector<128x128xbf16>
    %c0_12 = arith.constant 0 : index
    %c0_13 = arith.constant 0 : index
    %21 = vector.load %arg5[%c0_12, %c0_13] : memref<1x128xf32, #tpu.memory_space<vmem>>, vector<1x128xf32>
    %cst_14 = arith.constant dense<0.000000e+00> : vector<16x128xf32>
    %22 = tpu.matmul %19, %20, %cst_14 {dimension_numbers = #tpu.dot_dimension_numbers<[1], [0], [0], [1], [0, 0, 1, 1], [], []>} : vector<16x128xbf16>, vector<128x128xbf16>, vector<16x128xf32> -> vector<16x128xf32>
    %23 = vector.broadcast %21 : vector<1x128xf32> to vector<16x128xf32>
    %24 = arith.addf %22, %23 : vector<16x128xf32>
    %cst_15 = arith.constant 0.000000e+00 : f32
    %25 = vector.broadcast %cst_15 : f32 to vector<16x128xf32>
    %26 = arith.minimumf %24, %25 : vector<16x128xf32>
    %27 = math.exp %26 : vector<16x128xf32>
    %cst_16 = arith.constant 1.000000e+00 : f32
    %28 = vector.broadcast %cst_16 : f32 to vector<16x128xf32>
    %29 = arith.subf %27, %28 : vector<16x128xf32>
    %cst_17 = arith.constant 1.67326319 : f32
    %30 = vector.broadcast %cst_17 : f32 to vector<16x128xf32>
    %31 = arith.mulf %30, %29 : vector<16x128xf32>
    %cst_18 = arith.constant 0.000000e+00 : f32
    %32 = vector.broadcast %cst_18 : f32 to vector<16x128xf32>
    %33 = arith.cmpf ogt, %24, %32 : vector<16x128xf32>
    %34 = arith.select %33, %24, %31 : vector<16x128xi1>, vector<16x128xf32>
    %cst_19 = arith.constant 1.05070102 : f32
    %35 = vector.broadcast %cst_19 : f32 to vector<16x128xf32>
    %36 = arith.mulf %35, %34 : vector<16x128xf32>
    %37 = arith.truncf %36 : vector<16x128xf32> to vector<16x128xbf16>
    %c0_20 = arith.constant 0 : index
    %c0_21 = arith.constant 0 : index
    %38 = vector.load %arg6[%c0_20, %c0_21] : memref<128x128xbf16, #tpu.memory_space<vmem>>, vector<128x128xbf16>
    %c0_22 = arith.constant 0 : index
    %c0_23 = arith.constant 0 : index
    %39 = vector.load %arg7[%c0_22, %c0_23] : memref<1x128xf32, #tpu.memory_space<vmem>>, vector<1x128xf32>
    %cst_24 = arith.constant dense<0.000000e+00> : vector<16x128xf32>
    %40 = tpu.matmul %37, %38, %cst_24 {dimension_numbers = #tpu.dot_dimension_numbers<[1], [0], [0], [1], [0, 0, 1, 1], [], []>} : vector<16x128xbf16>, vector<128x128xbf16>, vector<16x128xf32> -> vector<16x128xf32>
    %41 = vector.broadcast %39 : vector<1x128xf32> to vector<16x128xf32>
    %42 = arith.addf %40, %41 : vector<16x128xf32>
    %cst_25 = arith.constant 0.000000e+00 : f32
    %43 = vector.broadcast %cst_25 : f32 to vector<16x128xf32>
    %44 = arith.minimumf %42, %43 : vector<16x128xf32>
    %45 = math.exp %44 : vector<16x128xf32>
    %cst_26 = arith.constant 1.000000e+00 : f32
    %46 = vector.broadcast %cst_26 : f32 to vector<16x128xf32>
    %47 = arith.subf %45, %46 : vector<16x128xf32>
    %cst_27 = arith.constant 1.67326319 : f32
    %48 = vector.broadcast %cst_27 : f32 to vector<16x128xf32>
    %49 = arith.mulf %48, %47 : vector<16x128xf32>
    %cst_28 = arith.constant 0.000000e+00 : f32
    %50 = vector.broadcast %cst_28 : f32 to vector<16x128xf32>
    %51 = arith.cmpf ogt, %42, %50 : vector<16x128xf32>
    %52 = arith.select %51, %42, %49 : vector<16x128xi1>, vector<16x128xf32>
    %cst_29 = arith.constant 1.05070102 : f32
    %53 = vector.broadcast %cst_29 : f32 to vector<16x128xf32>
    %54 = arith.mulf %53, %52 : vector<16x128xf32>
    %55 = arith.truncf %54 : vector<16x128xf32> to vector<16x128xbf16>
    %c0_30 = arith.constant 0 : index
    %c0_31 = arith.constant 0 : index
    %56 = vector.load %arg8[%c0_30, %c0_31] : memref<128x128xbf16, #tpu.memory_space<vmem>>, vector<128x128xbf16>
    %c0_32 = arith.constant 0 : index
    %c0_33 = arith.constant 0 : index
    %57 = vector.load %arg9[%c0_32, %c0_33] : memref<1x128xf32, #tpu.memory_space<vmem>>, vector<1x128xf32>
    %cst_34 = arith.constant dense<0.000000e+00> : vector<16x128xf32>
    %58 = tpu.matmul %55, %56, %cst_34 {dimension_numbers = #tpu.dot_dimension_numbers<[1], [0], [0], [1], [0, 0, 1, 1], [], []>} : vector<16x128xbf16>, vector<128x128xbf16>, vector<16x128xf32> -> vector<16x128xf32>
    %59 = vector.broadcast %57 : vector<1x128xf32> to vector<16x128xf32>
    %60 = arith.addf %58, %59 : vector<16x128xf32>
    %61 = math.tanh %60 : vector<16x128xf32>
    %62 = arith.truncf %61 : vector<16x128xf32> to vector<16x128xbf16>
    %c0_35 = arith.constant 0 : index
    %c0_36 = arith.constant 0 : index
    %63 = vector.load %arg10[%c0_35, %c0_36] : memref<16x128xbf16, #tpu.memory_space<vmem>>, vector<16x128xbf16>
    tpu.vector_store %arg10[%c0_35, %c0_36], %62 {strides = array<i32>} : memref<16x128xbf16, #tpu.memory_space<vmem>>, vector<16x128xbf16>,
    return
  }
  func.func @transform_0(%arg0: i32) -> (i32, i32) {
    %c0_i32 = arith.constant 0 : i32
    %c0_i32_0 = arith.constant 0 : i32
    return %arg0, %c0_i32 : i32, i32
  }
  func.func @transform_1(%arg0: i32) -> (i32, i32) {
    %c0_i32 = arith.constant 0 : i32
    %c0_i32_0 = arith.constant 0 : i32
    %c0_i32_1 = arith.constant 0 : i32
    return %c0_i32, %c0_i32_0 : i32, i32
  }
  func.func @transform_2(%arg0: i32) -> (i32, i32) {
    %c0_i32 = arith.constant 0 : i32
    %c0_i32_0 = arith.constant 0 : i32
    %c0_i32_1 = arith.constant 0 : i32
    return %c0_i32, %c0_i32_0 : i32, i32
  }
  func.func @transform_3(%arg0: i32) -> (i32, i32) {
    %c0_i32 = arith.constant 0 : i32
    %c0_i32_0 = arith.constant 0 : i32
    %c0_i32_1 = arith.constant 0 : i32
    return %c0_i32, %c0_i32_0 : i32, i32
  }
  func.func @transform_4(%arg0: i32) -> (i32, i32) {
    %c0_i32 = arith.constant 0 : i32
    %c0_i32_0 = arith.constant 0 : i32
    %c0_i32_1 = arith.constant 0 : i32
    return %c0_i32, %c0_i32_0 : i32, i32
  }
  func.func @transform_5(%arg0: i32) -> (i32, i32) {
    %c0_i32 = arith.constant 0 : i32
    %c0_i32_0 = arith.constant 0 : i32
    %c0_i32_1 = arith.constant 0 : i32
    return %c0_i32, %c0_i32_0 : i32, i32
  }
  func.func @transform_6(%arg0: i32) -> (i32, i32) {
    %c0_i32 = arith.constant 0 : i32
    %c0_i32_0 = arith.constant 0 : i32
    %c0_i32_1 = arith.constant 0 : i32
    return %c0_i32, %c0_i32_0 : i32, i32
  }
  func.func @transform_7(%arg0: i32) -> (i32, i32) {
    %c0_i32 = arith.constant 0 : i32
    %c0_i32_0 = arith.constant 0 : i32
    %c0_i32_1 = arith.constant 0 : i32
    return %c0_i32, %c0_i32_0 : i32, i32
  }
  func.func @transform_8(%arg0: i32) -> (i32, i32) {
    %c0_i32 = arith.constant 0 : i32
    %c0_i32_0 = arith.constant 0 : i32
    %c0_i32_1 = arith.constant 0 : i32
    return %c0_i32, %c0_i32_0 : i32, i32
  }
  func.func @transform_9(%arg0: i32) -> (i32, i32) {
    %c0_i32 = arith.constant 0 : i32
    %c0_i32_0 = arith.constant 0 : i32
    return %arg0, %c0_i32 : i32, i32
  }
}

</mosaic_0001>

<llo_original>
// kernel: action_model_forward.1
$region0: #{action_model_forward.1}
  #allocation0 [shape = 'u32[]', space=smem, size = 0x4, offset = 0x4, fixed_abs, tag = 'smem constant byte address 0x4 - core index']
  #allocation1 [shape = 'u32[144,128]{1,0:T(1,128)}', space=vmem, size = 0x12000, scoped, tag = 'internal scratch']
  %s0 = inlined_call_operand.vmem [shape: f32[64,32], index: 0, kind: input, shape index: {}]
  %s1 = inlined_call_operand.vmem [shape: bf16[32,128], index: 1, kind: input, shape index: {}]
  %s2 = inlined_call_operand.vmem [shape: f32[1,128], index: 2, kind: input, shape index: {}]
  %s3 = inlined_call_operand.vmem [shape: bf16[128,128], index: 3, kind: input, shape index: {}]
  %s4 = inlined_call_operand.vmem [shape: f32[1,128], index: 4, kind: input, shape index: {}]
  %s5 = inlined_call_operand.hbm [shape: bf16[128,128], index: 5, kind: input, shape index: {}]
  %s6 = inlined_call_operand.vmem [shape: f32[1,128], index: 6, kind: input, shape index: {}]
  %s7 = inlined_call_operand.hbm [shape: bf16[128,128], index: 7, kind: input, shape index: {}]
  %s8 = inlined_call_operand.vmem [shape: f32[1,128], index: 8, kind: input, shape index: {}]
  %s9 = inlined_call_operand.vmem [shape: bf16[64,128], index: 9, kind: output, shape index: {}]
  %s10 = sld [smem:[#allocation0]]
  $region77: #{action_model_forward.1} parent=0
    _
  %s12 = ssub.s32 1, %s10
  %s13 = scalar_select 0, %s12, %s10
  $region1: #{action_model_forward.1} parent=0
    #allocation2 [shape = 'u8[32768]{0}', space=vmem, size = 0x8000, scoped, tag = 'input window, operand 5, single buffered']
    #allocation3 [shape = 's32[2]{0}', space=sflag, size = 0x8, scoped, tag = 'scoped memory for action_model_forward.1']
    #allocation4 [shape = 'u8[32768]{0}', space=vmem, size = 0x8000, scoped, tag = 'input window, operand 7, single buffered']
    #allocation5 [shape = 's32[1]{0}', space=sflag, size = 0x4, scoped, tag = 'scoped memory for action_model_forward.1']
    %14 = vsyncpa [#allocation3], 0
    %15 = vsyncpa [#allocation5], 0
    loop: start=0, step=1, limit=6
    $region2: #{action_model_forward.1} parent=1 // loop_pre_header
      _
    $region3: #{action_model_forward.1} parent=1 // loop_header
      %s17 = sphi 0, %s21
      %p18 = scmp.ge.s32.totalorder %s17, 6
      %s27 = sphi 0, %s29
      %s30 = sphi 0, %s27
      %s31 = sphi 0, %s30
      %s47 = sphi 0, %s31
      %s51 = sphi 0, %s51
      %s53 = sphi 0, %s51
      %s54 = sphi 0, %s53
      %s68 = sphi 0, %s54
      %s72 = sphi 0, %s72
      %s74 = sphi 0, %s72
      %s75 = sphi 0, %s74
      %s89 = sphi 0, %s75
      %s93 = sphi 0, %s93
      %s95 = sphi 0, %s93
      %s96 = sphi 0, %s95
      %s110 = sphi 0, %s96
      %s114 = sphi 0, %s114
      %s116 = sphi 0, %s114
      %s117 = sphi 0, %s116
      %s131 = sphi 0, %s117
      %s135 = sphi 0, %s135
      %s137 = sphi 0, %s135
      %s138 = sphi 0, %s137
      %s152 = sphi 0, %s138
      %s156 = sphi 0, %s156
      %s158 = sphi 0, %s156
      %s159 = sphi 0, %s158
      %s173 = sphi 0, %s159
      %s177 = sphi 0, %s177
      %s179 = sphi 0, %s177
      %s180 = sphi 0, %s179
      %s194 = sphi 0, %s180
      %s198 = sphi 0, %s198
      %s200 = sphi 0, %s198
      %s201 = sphi 0, %s200
      %s215 = sphi 0, %s201
      %s221 = sphi 0, %s223
      %s224 = sphi 0, %s221
      %s225 = sphi 0, %s224
      %s241 = sphi 0, %s225
    $region4: #{action_model_forward.1} parent=1 // loop_header_branch
      %20 = sbr.rel (%p18) target = $region8
    $region5: #{action_model_forward.1} parent=1 // loop_body
      %s22 = ssub.s32 %s17, 1
      %s23 = ssub.s32 %s17, 2
      %s24 = sadd.s32 %s17, 1
      %s25 = ssub.s32 %s17, %s24
      %p26 = scmp.eq.s32.totalorder %s25, 0
      %s28 = sadd.s32 %s27, 1
      %s29 = scalar_select %p26, %s27, %s28
      %p32 = pneg %p26
      %p33 = scmp.eq.s32.totalorder %s17, 3
      %p34 = por %p32, %p33
      %p35 = scmp.ne.s32.totalorder %s27, %s30
      %p36 = scmp.eq.s32.totalorder %s17, 0
      %p37 = por %p35, %p36
      %p38 = scmp.ne.s32.totalorder %s27, %s30
      %p39 = scmp.eq.s32.totalorder %s22, 3
      %p40 = por %p38, %p39
      %p41 = scmp.ne.s32.totalorder %s30, %s31
      %p42 = scmp.eq.s32.totalorder %s22, 0
      %p43 = por %p41, %p42
      %p44 = scmp.ne.s32.totalorder %s30, %s31
      %p45 = scmp.eq.s32.totalorder %s23, 3
      %p46 = por %p44, %p45
      %p48 = scmp.ne.s32.totalorder %s31, %s47
      %p49 = scmp.eq.s32.totalorder %s23, 0
      %p50 = por %p48, %p49
      %s52 = sadd.s32 %s51, 1
      %p55 = scmp.eq.s32.totalorder %s17, 3
      %p56 = scmp.ne.s32.totalorder %s51, %s53
      %p57 = scmp.eq.s32.totalorder %s17, 0
      %p58 = por %p56, %p57
      %p59 = scmp.ne.s32.totalorder %s51, %s53
      %p60 = scmp.eq.s32.totalorder %s22, 3
      %p61 = por %p59, %p60
      %p62 = scmp.ne.s32.totalorder %s53, %s54
      %p63 = scmp.eq.s32.totalorder %s22, 0
      %p64 = por %p62, %p63
      %p65 = scmp.ne.s32.totalorder %s53, %s54
      %p66 = scmp.eq.s32.totalorder %s23, 3
      %p67 = por %p65, %p66
      %p69 = scmp.ne.s32.totalorder %s54, %s68
      %p70 = scmp.eq.s32.totalorder %s23, 0
      %p71 = por %p69, %p70
      %s73 = sadd.s32 %s72, 1
      %p76 = scmp.eq.s32.totalorder %s17, 3
      %p77 = scmp.ne.s32.totalorder %s72, %s74
      %p78 = scmp.eq.s32.totalorder %s17, 0
      %p79 = por %p77, %p78
      %p80 = scmp.ne.s32.totalorder %s72, %s74
      %p81 = scmp.eq.s32.totalorder %s22, 3
      %p82 = por %p80, %p81
      %p83 = scmp.ne.s32.totalorder %s74, %s75
      %p84 = scmp.eq.s32.totalorder %s22, 0
      %p85 = por %p83, %p84
      %p86 = scmp.ne.s32.totalorder %s74, %s75
      %p87 = scmp.eq.s32.totalorder %s23, 3
      %p88 = por %p86, %p87
      %p90 = scmp.ne.s32.totalorder %s75, %s89
      %p91 = scmp.eq.s32.totalorder %s23, 0
      %p92 = por %p90, %p91
      %s94 = sadd.s32 %s93, 1
      %p97 = scmp.eq.s32.totalorder %s17, 3
      %p98 = scmp.ne.s32.totalorder %s93, %s95
      %p99 = scmp.eq.s32.totalorder %s17, 0
      %p100 = por %p98, %p99
      %p101 = scmp.ne.s32.totalorder %s93, %s95
      %p102 = scmp.eq.s32.totalorder %s22, 3
      %p103 = por %p101, %p102
      %p104 = scmp.ne.s32.totalorder %s95, %s96
      %p105 = scmp.eq.s32.totalorder %s22, 0
      %p106 = por %p104, %p105
      %p107 = scmp.ne.s32.totalorder %s95, %s96
      %p108 = scmp.eq.s32.totalorder %s23, 3
      %p109 = por %p107, %p108
      %p111 = scmp.ne.s32.totalorder %s96, %s110
      %p112 = scmp.eq.s32.totalorder %s23, 0
      %p113 = por %p111, %p112
      %s115 = sadd.s32 %s114, 1
      %p118 = scmp.eq.s32.totalorder %s17, 3
      %p119 = scmp.ne.s32.totalorder %s114, %s116
      %p120 = scmp.eq.s32.totalorder %s17, 0
      %p121 = por %p119, %p120
      %p122 = scmp.ne.s32.totalorder %s114, %s116
      %p123 = scmp.eq.s32.totalorder %s22, 3
      %p124 = por %p122, %p123
      %p125 = scmp.ne.s32.totalorder %s116, %s117
      %p126 = scmp.eq.s32.totalorder %s22, 0
      %p127 = por %p125, %p126
      %p128 = scmp.ne.s32.totalorder %s116, %s117
      %p129 = scmp.eq.s32.totalorder %s23, 3
      %p130 = por %p128, %p129
      %p132 = scmp.ne.s32.totalorder %s117, %s131
      %p133 = scmp.eq.s32.totalorder %s23, 0
      %p134 = por %p132, %p133
      %s136 = sadd.s32 %s135, 1
      %p139 = scmp.eq.s32.totalorder %s17, 3
      %p140 = scmp.ne.s32.totalorder %s135, %s137
      %p141 = scmp.eq.s32.totalorder %s17, 0
      %p142 = por %p140, %p141
      %p143 = scmp.ne.s32.totalorder %s135, %s137
      %p144 = scmp.eq.s32.totalorder %s22, 3
      %p145 = por %p143, %p144
      %p146 = scmp.ne.s32.totalorder %s137, %s138
      %p147 = scmp.eq.s32.totalorder %s22, 0
      %p148 = por %p146, %p147
      %p149 = scmp.ne.s32.totalorder %s137, %s138
      %p150 = scmp.eq.s32.totalorder %s23, 3
      %p151 = por %p149, %p150
      %p153 = scmp.ne.s32.totalorder %s138, %s152
      %p154 = scmp.eq.s32.totalorder %s23, 0
      %p155 = por %p153, %p154
      %s157 = sadd.s32 %s156, 1
      %p160 = scmp.eq.s32.totalorder %s17, 3
      %p161 = scmp.ne.s32.totalorder %s156, %s158
      %p162 = scmp.eq.s32.totalorder %s17, 0
      %p163 = por %p161, %p162
      %p164 = scmp.ne.s32.totalorder %s156, %s158
      %p165 = scmp.eq.s32.totalorder %s22, 3
      %p166 = por %p164, %p165
      %p167 = scmp.ne.s32.totalorder %s158, %s159
      %p168 = scmp.eq.s32.totalorder %s22, 0
      %p169 = por %p167, %p168
      %p170 = scmp.ne.s32.totalorder %s158, %s159
      %p171 = scmp.eq.s32.totalorder %s23, 3
      %p172 = por %p170, %p171
      %p174 = scmp.ne.s32.totalorder %s159, %s173
      %p175 = scmp.eq.s32.totalorder %s23, 0
      %p176 = por %p174, %p175
      %s178 = sadd.s32 %s177, 1
      %p181 = scmp.eq.s32.totalorder %s17, 3
      %p182 = scmp.ne.s32.totalorder %s177, %s179
      %p183 = scmp.eq.s32.totalorder %s17, 0
      %p184 = por %p182, %p183
      %p185 = scmp.ne.s32.totalorder %s177, %s179
      %p186 = scmp.eq.s32.totalorder %s22, 3
      %p187 = por %p185, %p186
      %p188 = scmp.ne.s32.totalorder %s179, %s180
      %p189 = scmp.eq.s32.totalorder %s22, 0
      %p190 = por %p188, %p189
      %p191 = scmp.ne.s32.totalorder %s179, %s180
      %p192 = scmp.eq.s32.totalorder %s23, 3
      %p193 = por %p191, %p192
      %p195 = scmp.ne.s32.totalorder %s180, %s194
      %p196 = scmp.eq.s32.totalorder %s23, 0
      %p197 = por %p195, %p196
      %s199 = sadd.s32 %s198, 1
      %p202 = scmp.eq.s32.totalorder %s17, 3
      %p203 = scmp.ne.s32.totalorder %s198, %s200
      %p204 = scmp.eq.s32.totalorder %s17, 0
      %p205 = por %p203, %p204
      %p206 = scmp.ne.s32.totalorder %s198, %s200
      %p207 = scmp.eq.s32.totalorder %s22, 3
      %p208 = por %p206, %p207
      %p209 = scmp.ne.s32.totalorder %s200, %s201
      %p210 = scmp.eq.s32.totalorder %s22, 0
      %p211 = por %p209, %p210
      %p212 = scmp.ne.s32.totalorder %s200, %s201
      %p213 = scmp.eq.s32.totalorder %s23, 3
      %p214 = por %p212, %p213
      %p216 = scmp.ne.s32.totalorder %s201, %s215
      %p217 = scmp.eq.s32.totalorder %s23, 0
      %p218 = por %p216, %p217
      %s219 = ssub.s32 %s17, %s24
      %p220 = scmp.eq.s32.totalorder %s219, 0
      %s222 = sadd.s32 %s221, 1
      %s223 = scalar_select %p220, %s221, %s222
      %p226 = pneg %p220
      %p227 = scmp.eq.s32.totalorder %s17, 3
      %p228 = por %p226, %p227
      %p229 = scmp.ne.s32.totalorder %s221, %s224
      %p230 = scmp.eq.s32.totalorder %s17, 0
      %p231 = por %p229, %p230
      %p232 = scmp.ne.s32.totalorder %s221, %s224
      %p233 = scmp.eq.s32.totalorder %s22, 3
      %p234 = por %p232, %p233
      %p235 = scmp.ne.s32.totalorder %s224, %s225
      %p236 = scmp.eq.s32.totalorder %s22, 0
      %p237 = por %p235, %p236
      %p238 = scmp.ne.s32.totalorder %s224, %s225
      %p239 = scmp.eq.s32.totalorder %s23, 3
      %p240 = por %p238, %p239
      %p242 = scmp.ne.s32.totalorder %s225, %s241
      %p243 = scmp.eq.s32.totalorder %s23, 0
      %p244 = por %p242, %p243
      %p245 = scmp.le.s32.totalorder 1, %s17
      %p246 = scmp.lt.s32.totalorder %s17, 5
      %p247 = pnand %p245, %p246
      %p248 = pneg %p247
      // Predicated region
      $region9: #{action_model_forward.1} parent=5 // pred_check
        _
      $region10: #{action_model_forward.1} parent=5 // pred_check_branch
        %250 = sbr.rel (%p247) target = $region12
      $region11: #{action_model_forward.1} parent=5 // pred_region
        %s251 = ssub.s32 %s17, 1
        // Predicated region
        $region13: #{action_model_forward.1} parent=11 // pred_check
          %p252 = pneg %p64
        $region14: #{action_model_forward.1} parent=11 // pred_check_branch
          %254 = sbr.rel (%p252) target = $region16
        $region15: #{action_model_forward.1} parent=11 // pred_region
          _
        $region16: #{action_model_forward.1} parent=11 // pred_fallthru
          _
        // Predicated region
        $region17: #{action_model_forward.1} parent=11 // pred_check
          %p255 = pneg %p85
        $region18: #{action_model_forward.1} parent=11 // pred_check_branch
          %257 = sbr.rel (%p255) target = $region20
        $region19: #{action_model_forward.1} parent=11 // pred_region
          _
        $region20: #{action_model_forward.1} parent=11 // pred_fallthru
          _
        // Predicated region
        $region21: #{action_model_forward.1} parent=11 // pred_check
          %p258 = pneg %p106
        $region22: #{action_model_forward.1} parent=11 // pred_check_branch
          %260 = sbr.rel (%p258) target = $region24
        $region23: #{action_model_forward.1} parent=11 // pred_region
          _
        $region24: #{action_model_forward.1} parent=11 // pred_fallthru
          _
        // Predicated region
        $region25: #{action_model_forward.1} parent=11 // pred_check
          %p261 = pneg %p127
        $region26: #{action_model_forward.1} parent=11 // pred_check_branch
          %263 = sbr.rel (%p261) target = $region28
        $region27: #{action_model_forward.1} parent=11 // pred_region
          _
        $region28: #{action_model_forward.1} parent=11 // pred_fallthru
          _
        // Predicated region
        $region29: #{action_model_forward.1} parent=11 // pred_check
          %p264 = pneg %p148
        $region30: #{action_model_forward.1} parent=11 // pred_check_branch
          %266 = sbr.rel (%p264) target = $region32
        $region31: #{action_model_forward.1} parent=11 // pred_region
          %s268 = ssub.s32 1024, 1024
          %269 = vsyncadd [#allocation3], %s268
          %s270 = sshll.u32 [#allocation2], 4
          %s271 = int_to_ptr.vmem [resolvable:$true] %s270
          %276 = dma.hbm_to_vmem [thread:$0]  %s5, 1024, %s271, [#allocation3], 64, 64, 4
        $region32: #{action_model_forward.1} parent=11 // pred_fallthru
          _
        // Predicated region
        $region33: #{action_model_forward.1} parent=11 // pred_check
          %p277 = pneg %p169
        $region34: #{action_model_forward.1} parent=11 // pred_check_branch
          %279 = sbr.rel (%p277) target = $region36
        $region35: #{action_model_forward.1} parent=11 // pred_region
          _
        $region36: #{action_model_forward.1} parent=11 // pred_fallthru
          _
        // Predicated region
        $region37: #{action_model_forward.1} parent=11 // pred_check
          %p280 = pneg %p190
        $region38: #{action_model_forward.1} parent=11 // pred_check_branch
          %282 = sbr.rel (%p280) target = $region40
        $region39: #{action_model_forward.1} parent=11 // pred_region
          %s284 = ssub.s32 1024, 1024
          %285 = vsyncadd [#allocation5], %s284
          %s286 = sshll.u32 [#allocation4], 4
          %s287 = int_to_ptr.vmem [resolvable:$true] %s286
          %292 = dma.hbm_to_vmem [thread:$0]  %s7, 1024, %s287, [#allocation5], 64, 64, 4
        $region40: #{action_model_forward.1} parent=11 // pred_fallthru
          _
        // Predicated region
        $region41: #{action_model_forward.1} parent=11 // pred_check
          %p293 = pneg %p211
        $region42: #{action_model_forward.1} parent=11 // pred_check_branch
          %295 = sbr.rel (%p293) target = $region44
        $region43: #{action_model_forward.1} parent=11 // pred_region
          _
        $region44: #{action_model_forward.1} parent=11 // pred_fallthru
          _
      $region12: #{action_model_forward.1} parent=5 // pred_fallthru
        _
      %p296 = scmp.lt.s32.totalorder %s17, 4
      // Predicated region
      $region45: #{action_model_forward.1} parent=5 // pred_check
        %p297 = pneg %p296
      $region46: #{action_model_forward.1} parent=5 // pred_check_branch
        %299 = sbr.rel (%p297) target = $region48
      $region47: #{action_model_forward.1} parent=5 // pred_region
        // Predicated region
        $region49: #{action_model_forward.1} parent=47 // pred_check
          %p300 = pneg %p37
        $region50: #{action_model_forward.1} parent=47 // pred_check_branch
          %302 = sbr.rel (%p300) target = $region52
        $region51: #{action_model_forward.1} parent=47 // pred_region
          %s303 = smul.u32 2, %s17
          %p304 = scmp.lt.s32.totalorder %s303, 7
          %s305 = scalar_select %p304, %s303, 7
          %s306 = smul.addr %s305, 8
          %s307 = scalar_lea.vmem %s0, %s306
          %s308 = smul.u32 2, %s17
        $region52: #{action_model_forward.1} parent=47 // pred_fallthru
          _
      $region48: #{action_model_forward.1} parent=5 // pred_fallthru
        _
      %p309 = scmp.le.s32.totalorder 1, %s17
      %p310 = scmp.lt.s32.totalorder %s17, 5
      %p311 = pnand %p309, %p310
      %p312 = pneg %p311
      // Predicated region
      $region53: #{action_model_forward.1} parent=5 // pred_check
        _
      $region54: #{action_model_forward.1} parent=5 // pred_check_branch
        %314 = sbr.rel (%p311) target = $region56
      $region55: #{action_model_forward.1} parent=5 // pred_region
        %s315 = ssub.s32 %s17, 1
        // Predicated region
        $region57: #{action_model_forward.1} parent=55 // pred_check
          %p316 = pneg %p148
        $region58: #{action_model_forward.1} parent=55 // pred_check_branch
          %318 = sbr.rel (%p316) target = $region60
        $region59: #{action_model_forward.1} parent=55 // pred_region
          %319 = dma.done [#allocation3], 1024
        $region60: #{action_model_forward.1} parent=55 // pred_fallthru
          _
        // Predicated region
        $region61: #{action_model_forward.1} parent=55 // pred_check
          %p320 = pneg %p190
        $region62: #{action_model_forward.1} parent=55 // pred_check_branch
          %322 = sbr.rel (%p320) target = $region64
        $region63: #{action_model_forward.1} parent=55 // pred_region
          %323 = dma.done [#allocation5], 1024
        $region64: #{action_model_forward.1} parent=55 // pred_fallthru
          _
        %s324 = smul.u32 2, %s22
        %p325 = scmp.lt.s32.totalorder %s324, 7
        %s326 = scalar_select %p325, %s324, 7
        %s327 = smul.addr %s326, 8
        %s328 = scalar_lea.vmem %s0, %s327
        %p329 = pneg %p43
        %p330 = pneg %p40
        %p331 = pneg %p64
        %p332 = pneg %p61
        %p333 = pneg %p85
        %p334 = pneg %p82
        %p335 = pneg %p106
        %p336 = pneg %p103
        %p337 = pneg %p127
        %p338 = pneg %p124
        %p339 = pneg %p148
        %p340 = pneg %p145
        %p341 = pneg %p169
        %p342 = pneg %p166
        %p343 = pneg %p190
        %p344 = pneg %p187
        %p345 = pneg %p211
        %p346 = pneg %p208
        %p347 = pneg %p237
        %p348 = pneg %p234
        %s349 = smul.u32 2, %s22
        %p350 = scmp.lt.s32.totalorder %s349, 7
        %s351 = scalar_select %p350, %s349, 7
        %s352 = smul.addr %s351, 4
        %s353 = scalar_lea.vmem %s9, %s352
        %s354 = smul.u32 2, %s22
        %p355 = scmp.lt.s32.totalorder %s354, 7
        %s356 = scalar_select %p355, %s354, 7
        %s357 = smul.addr %s356, 8
        %s358 = scalar_lea.vmem %s0, %s357
        %s359 = smul.u32 2, %s22
        %s360 = smul.u32 2, %s22
        %p361 = scmp.lt.s32.totalorder %s360, 7
        %s362 = scalar_select %p361, %s360, 7
        %s363 = smul.addr %s362, 4
        %s364 = scalar_lea.vmem %s9, %s363
        %s365 = smul.u32 2, %s22
        %v367 = vld [vmem:[%s358] sm:$0xff]
        %v368 = vld [vmem:[%s358 + $0x8] sm:$0xff]
        %v369 = vpack.c.bf16 %v368, %v367
        %v370 = vld [vmem:[%s1] sm:$0xf]
        %v371 = vld [vmem:[%s1 + $0x4] sm:$0xf]
        %v372 = vld [vmem:[%s1 + $0x8] sm:$0xf]
        %v373 = vld [vmem:[%s1 + $0xc] sm:$0xf]
        %v374 = vld [vmem:[%s2] sm:$0x1]
        %v376 = vlaneseq
        %v377 = vshrl.u32 %v376, 7
        %v378 = vsub.s32 0, %v377
        %v379 = vrot.slane %v374, %v378
        %v385 = vunpack.c.l.b16 %v370
        %v386 = vunpack.c.l.b16 %v371
        %v387 = vunpack.c.l.b16 %v372
        %v388 = vunpack.c.l.b16 %v373
        %v389 = vpack.c.b16 %v386, %v385
        %v390 = vpack.c.b16 %v388, %v387
        %vm393 = vcmask 261120
        %v395 = vsel %vm393, %v369, 0
        %397 = vmatprep.subr.bf16.mxu0 0
        %398 = vmatpush1.bf16.msra.mxu0 %v389
        %399 = vmatprep.subr.bf16.mxu0 0
        %400 = vmatpush1.bf16.msra.mxu0 %v390
        %401 = vmatprep.subr.bf16.mxu0 0
        %402 = vmatpush1.bf16.msra.mxu0 0
        %403 = vmatprep.subr.bf16.mxu0 0
        %404 = vmatpush1.bf16.msra.mxu0 0
        %405 = vmatprep.subr.bf16.mxu0 0
        %406 = vmatpush1.bf16.msra.mxu0 0
        %407 = vmatprep.subr.bf16.mxu0 0
        %408 = vmatpush1.bf16.msra.mxu0 0
        %409 = vmatprep.subr.bf16.mxu0 0
        %410 = vmatpush1.bf16.msra.mxu0 0
        %411 = vmatprep.subr.bf16.mxu0 0
        %412 = vmatpush1.bf16.msra.mxu0 0
        %413 = vmatprep.subr.bf16.mxu0 0
        %414 = vmatpush1.bf16.msra.mxu0 0
        %415 = vmatprep.subr.bf16.mxu0 0
        %416 = vmatpush1.bf16.msra.mxu0 0
        %417 = vmatprep.subr.bf16.mxu0 0
        %418 = vmatpush1.bf16.msra.mxu0 0
        %419 = vmatprep.subr.bf16.mxu0 0
        %420 = vmatpush1.bf16.msra.mxu0 0
        %421 = vmatprep.subr.bf16.mxu0 0
        %422 = vmatpush1.bf16.msra.mxu0 0
        %423 = vmatprep.subr.bf16.mxu0 0
        %424 = vmatpush1.bf16.msra.mxu0 0
        %425 = vmatprep.subr.bf16.mxu0 0
        %426 = vmatpush1.bf16.msra.mxu0 0
        %427 = vmatprep.subr.bf16.mxu0 0
        %428 = vmatpush1.bf16.msra.mxu0 0
        %429 = vmatprep.mubr.bf16.mxu0 0
        %430 = vmatmul.mubr.bf16.gmra.mrb[0].mxu0 %v395
        %v431 = vpop.f32.mrb[0].mxu0
        %v432 = vadd.f32 %v379, %v431
        %v433 = vpop.f32.mrb[0].mxu0
        %v434 = vpop.f32.mrb[0].mxu0
        %v435 = vadd.f32 %v379, %v434
        %v436 = vpop.f32.mrb[0].mxu0
        %437 = vdwg.mxu0
        %v438 = vmin.f32 %v432, 0.0
        %v439 = vmin.f32 %v435, 0.0
        %v440 = vmul.f32 %v438, 1.442695
        %v441 = vpow.pop %v440
        %v442 = vmul.f32 %v439, 1.442695
        %v443 = vpow.pop %v442
        %v444 = vsub.f32 %v441, 1.0
        %v445 = vsub.f32 %v443, 1.0
        %v446 = vmul.f32 %v444, 1.6732632
        %v447 = vmul.f32 %v445, 1.6732632
        %vm448 = vcmp.gt.f32.partialorder %v432, 0.0
        %vm449 = vcmp.gt.f32.partialorder %v435, 0.0
        %v450 = vsel %vm448, %v432, %v446
        %v451 = vsel %vm449, %v435, %v447
        %v452 = vmul.f32 %v450, 1.050701
        %v453 = vmul.f32 %v451, 1.050701
        %v454 = vpack.c.bf16 %v453, %v452
        %v455 = vld [vmem:[%s3] sm:$0xf]
        %v456 = vld [vmem:[%s3 + $0x4] sm:$0xf]
        %v457 = vld [vmem:[%s3 + $0x8] sm:$0xf]
        %v458 = vld [vmem:[%s3 + $0xc] sm:$0xf]
        %v459 = vld [vmem:[%s3 + $0x10] sm:$0xf]
        %v460 = vld [vmem:[%s3 + $0x14] sm:$0xf]
        %v461 = vld [vmem:[%s3 + $0x18] sm:$0xf]
        %v462 = vld [vmem:[%s3 + $0x1c] sm:$0xf]
        %v463 = vld [vmem:[%s3 + $0x20] sm:$0xf]
        %v464 = vld [vmem:[%s3 + $0x24] sm:$0xf]
        %v465 = vld [vmem:[%s3 + $0x28] sm:$0xf]
        %v466 = vld [vmem:[%s3 + $0x2c] sm:$0xf]
        %v467 = vld [vmem:[%s3 + $0x30] sm:$0xf]
        %v468 = vld [vmem:[%s3 + $0x34] sm:$0xf]
        %v469 = vld [vmem:[%s3 + $0x38] sm:$0xf]
        %v470 = vld [vmem:[%s3 + $0x3c] sm:$0xf]
        %v471 = vld [vmem:[%s4] sm:$0x1]
        %v473 = vlaneseq
        %v474 = vshrl.u32 %v473, 7
        %v475 = vsub.s32 0, %v474
        %v476 = vrot.slane %v471, %v475
        %v494 = vunpack.c.l.b16 %v455
        %v495 = vunpack.c.l.b16 %v456
        %v496 = vunpack.c.l.b16 %v457
        %v497 = vunpack.c.l.b16 %v458
        %v498 = vunpack.c.l.b16 %v459
        %v499 = vunpack.c.l.b16 %v460
        %v500 = vunpack.c.l.b16 %v461
        %v501 = vunpack.c.l.b16 %v462
        %v502 = vunpack.c.l.b16 %v463
        %v503 = vunpack.c.l.b16 %v464
        %v504 = vunpack.c.l.b16 %v465
        %v505 = vunpack.c.l.b16 %v466
        %v506 = vunpack.c.l.b16 %v467
        %v507 = vunpack.c.l.b16 %v468
        %v508 = vunpack.c.l.b16 %v469
        %v509 = vunpack.c.l.b16 %v470
        %v510 = vpack.c.b16 %v495, %v494
        %v511 = vpack.c.b16 %v497, %v496
        %v512 = vpack.c.b16 %v499, %v498
        %v513 = vpack.c.b16 %v501, %v500
        %v514 = vpack.c.b16 %v503, %v502
        %v515 = vpack.c.b16 %v505, %v504
        %v516 = vpack.c.b16 %v507, %v506
        %v517 = vpack.c.b16 %v509, %v508
        %526 = vmatprep.subr.bf16.mxu0 0
        %527 = vmatpush1.bf16.msra.mxu0 %v510
        %528 = vmatprep.subr.bf16.mxu0 0
        %529 = vmatpush1.bf16.msra.mxu0 %v511
        %530 = vmatprep.subr.bf16.mxu0 0
        %531 = vmatpush1.bf16.msra.mxu0 %v512
        %532 = vmatprep.subr.bf16.mxu0 0
        %533 = vmatpush1.bf16.msra.mxu0 %v513
        %534 = vmatprep.subr.bf16.mxu0 0
        %535 = vmatpush1.bf16.msra.mxu0 %v514
        %536 = vmatprep.subr.bf16.mxu0 0
        %537 = vmatpush1.bf16.msra.mxu0 %v515
        %538 = vmatprep.subr.bf16.mxu0 0
        %539 = vmatpush1.bf16.msra.mxu0 %v516
        %540 = vmatprep.subr.bf16.mxu0 0
        %541 = vmatpush1.bf16.msra.mxu0 %v517
        %542 = vmatprep.subr.bf16.mxu0 0
        %543 = vmatpush1.bf16.msra.mxu0 0
        %544 = vmatprep.subr.bf16.mxu0 0
        %545 = vmatpush1.bf16.msra.mxu0 0
        %546 = vmatprep.subr.bf16.mxu0 0
        %547 = vmatpush1.bf16.msra.mxu0 0
        %548 = vmatprep.subr.bf16.mxu0 0
        %549 = vmatpush1.bf16.msra.mxu0 0
        %550 = vmatprep.subr.bf16.mxu0 0
        %551 = vmatpush1.bf16.msra.mxu0 0
        %552 = vmatprep.subr.bf16.mxu0 0
        %553 = vmatpush1.bf16.msra.mxu0 0
        %554 = vmatprep.subr.bf16.mxu0 0
        %555 = vmatpush1.bf16.msra.mxu0 0
        %556 = vmatprep.subr.bf16.mxu0 0
        %557 = vmatpush1.bf16.msra.mxu0 0
        %558 = vmatprep.mubr.bf16.mxu0 0
        %559 = vmatmul.mubr.bf16.gmra.mrb[0].mxu0 %v454
        %v560 = vpop.f32.mrb[0].mxu0
        %v561 = vadd.f32 %v476, %v560
        %v562 = vpop.f32.mrb[0].mxu0
        %v563 = vpop.f32.mrb[0].mxu0
        %v564 = vadd.f32 %v476, %v563
        %v565 = vpop.f32.mrb[0].mxu0
        %566 = vdwg.mxu0
        %v567 = vmin.f32 %v561, 0.0
        %v568 = vmin.f32 %v564, 0.0
        %v569 = vmul.f32 %v567, 1.442695
        %v570 = vpow.pop %v569
        %v571 = vmul.f32 %v568, 1.442695
        %v572 = vpow.pop %v571
        %v573 = vsub.f32 %v570, 1.0
        %v574 = vsub.f32 %v572, 1.0
        %v575 = vmul.f32 %v573, 1.6732632
        %v576 = vmul.f32 %v574, 1.6732632
        %vm577 = vcmp.gt.f32.partialorder %v561, 0.0
        %vm578 = vcmp.gt.f32.partialorder %v564, 0.0
        %v579 = vsel %vm577, %v561, %v575
        %v580 = vsel %vm578, %v564, %v576
        %v581 = vmul.f32 %v579, 1.050701
        %v582 = vmul.f32 %v580, 1.050701
        %v583 = vpack.c.bf16 %v582, %v581
        %v584 = vld [vmem:[#allocation2] sm:$0xf]
        %v585 = vld [vmem:[#allocation2 + $0x4] sm:$0xf]
        %v586 = vld [vmem:[#allocation2 + $0x8] sm:$0xf]
        %v587 = vld [vmem:[#allocation2 + $0xc] sm:$0xf]
        %v588 = vld [vmem:[#allocation2 + $0x10] sm:$0xf]
        %v589 = vld [vmem:[#allocation2 + $0x14] sm:$0xf]
        %v590 = vld [vmem:[#allocation2 + $0x18] sm:$0xf]
        %v591 = vld [vmem:[#allocation2 + $0x1c] sm:$0xf]
        %v592 = vld [vmem:[#allocation2 + $0x20] sm:$0xf]
        %v593 = vld [vmem:[#allocation2 + $0x24] sm:$0xf]
        %v594 = vld [vmem:[#allocation2 + $0x28] sm:$0xf]
        %v595 = vld [vmem:[#allocation2 + $0x2c] sm:$0xf]
        %v596 = vld [vmem:[#allocation2 + $0x30] sm:$0xf]
        %v597 = vld [vmem:[#allocation2 + $0x34] sm:$0xf]
        %v598 = vld [vmem:[#allocation2 + $0x38] sm:$0xf]
        %v599 = vld [vmem:[#allocation2 + $0x3c] sm:$0xf]
        %v600 = vld [vmem:[%s6] sm:$0x1]
        %v602 = vlaneseq
        %v603 = vshrl.u32 %v602, 7
        %v604 = vsub.s32 0, %v603
        %v605 = vrot.slane %v600, %v604
        %v623 = vunpack.c.l.b16 %v584
        %v624 = vunpack.c.l.b16 %v585
        %v625 = vunpack.c.l.b16 %v586
        %v626 = vunpack.c.l.b16 %v587
        %v627 = vunpack.c.l.b16 %v588
        %v628 = vunpack.c.l.b16 %v589
        %v629 = vunpack.c.l.b16 %v590
        %v630 = vunpack.c.l.b16 %v591
        %v631 = vunpack.c.l.b16 %v592
        %v632 = vunpack.c.l.b16 %v593
        %v633 = vunpack.c.l.b16 %v594
        %v634 = vunpack.c.l.b16 %v595
        %v635 = vunpack.c.l.b16 %v596
        %v636 = vunpack.c.l.b16 %v597
        %v637 = vunpack.c.l.b16 %v598
        %v638 = vunpack.c.l.b16 %v599
        %v639 = vpack.c.b16 %v624, %v623
        %v640 = vpack.c.b16 %v626, %v625
        %v641 = vpack.c.b16 %v628, %v627
        %v642 = vpack.c.b16 %v630, %v629
        %v643 = vpack.c.b16 %v632, %v631
        %v644 = vpack.c.b16 %v634, %v633
        %v645 = vpack.c.b16 %v636, %v635
        %v646 = vpack.c.b16 %v638, %v637
        %655 = vmatprep.subr.bf16.mxu0 0
        %656 = vmatpush1.bf16.msra.mxu0 %v639
        %657 = vmatprep.subr.bf16.mxu0 0
        %658 = vmatpush1.bf16.msra.mxu0 %v640
        %659 = vmatprep.subr.bf16.mxu0 0
        %660 = vmatpush1.bf16.msra.mxu0 %v641
        %661 = vmatprep.subr.bf16.mxu0 0
        %662 = vmatpush1.bf16.msra.mxu0 %v642
        %663 = vmatprep.subr.bf16.mxu0 0
        %664 = vmatpush1.bf16.msra.mxu0 %v643
        %665 = vmatprep.subr.bf16.mxu0 0
        %666 = vmatpush1.bf16.msra.mxu0 %v644
        %667 = vmatprep.subr.bf16.mxu0 0
        %668 = vmatpush1.bf16.msra.mxu0 %v645
        %669 = vmatprep.subr.bf16.mxu0 0
        %670 = vmatpush1.bf16.msra.mxu0 %v646
        %671 = vmatprep.subr.bf16.mxu0 0
        %672 = vmatpush1.bf16.msra.mxu0 0
        %673 = vmatprep.subr.bf16.mxu0 0
        %674 = vmatpush1.bf16.msra.mxu0 0
        %675 = vmatprep.subr.bf16.mxu0 0
        %676 = vmatpush1.bf16.msra.mxu0 0
        %677 = vmatprep.subr.bf16.mxu0 0
        %678 = vmatpush1.bf16.msra.mxu0 0
        %679 = vmatprep.subr.bf16.mxu0 0
        %680 = vmatpush1.bf16.msra.mxu0 0
        %681 = vmatprep.subr.bf16.mxu0 0
        %682 = vmatpush1.bf16.msra.mxu0 0
        %683 = vmatprep.subr.bf16.mxu0 0
        %684 = vmatpush1.bf16.msra.mxu0 0
        %685 = vmatprep.subr.bf16.mxu0 0
        %686 = vmatpush1.bf16.msra.mxu0 0
        %687 = vmatprep.mubr.bf16.mxu0 0
        %688 = vmatmul.mubr.bf16.gmra.mrb[0].mxu0 %v583
        %v689 = vpop.f32.mrb[0].mxu0
        %v690 = vadd.f32 %v605, %v689
        %v691 = vpop.f32.mrb[0].mxu0
        %v692 = vpop.f32.mrb[0].mxu0
        %v693 = vadd.f32 %v605, %v692
        %v694 = vpop.f32.mrb[0].mxu0
        %695 = vdwg.mxu0
        %v696 = vmin.f32 %v690, 0.0
        %v697 = vmin.f32 %v693, 0.0
        %v698 = vmul.f32 %v696, 1.442695
        %v699 = vpow.pop %v698
        %v700 = vmul.f32 %v697, 1.442695
        %v701 = vpow.pop %v700
        %v702 = vsub.f32 %v699, 1.0
        %v703 = vsub.f32 %v701, 1.0
        %v704 = vmul.f32 %v702, 1.6732632
        %v705 = vmul.f32 %v703, 1.6732632
        %vm706 = vcmp.gt.f32.partialorder %v690, 0.0
        %vm707 = vcmp.gt.f32.partialorder %v693, 0.0
        %v708 = vsel %vm706, %v690, %v704
        %v709 = vsel %vm707, %v693, %v705
        %v710 = vmul.f32 %v708, 1.050701
        %v711 = vmul.f32 %v709, 1.050701
        %v712 = vpack.c.bf16 %v711, %v710
        %v713 = vld [vmem:[#allocation4] sm:$0xf]
        %v714 = vld [vmem:[#allocation4 + $0x4] sm:$0xf]
        %v715 = vld [vmem:[#allocation4 + $0x8] sm:$0xf]
        %v716 = vld [vmem:[#allocation4 + $0xc] sm:$0xf]
        %v717 = vld [vmem:[#allocation4 + $0x10] sm:$0xf]
        %v718 = vld [vmem:[#allocation4 + $0x14] sm:$0xf]
        %v719 = vld [vmem:[#allocation4 + $0x18] sm:$0xf]
        %v720 = vld [vmem:[#allocation4 + $0x1c] sm:$0xf]
        %v721 = vld [vmem:[#allocation4 + $0x20] sm:$0xf]
        %v722 = vld [vmem:[#allocation4 + $0x24] sm:$0xf]
        %v723 = vld [vmem:[#allocation4 + $0x28] sm:$0xf]
        %v724 = vld [vmem:[#allocation4 + $0x2c] sm:$0xf]
        %v725 = vld [vmem:[#allocation4 + $0x30] sm:$0xf]
        %v726 = vld [vmem:[#allocation4 + $0x34] sm:$0xf]
        %v727 = vld [vmem:[#allocation4 + $0x38] sm:$0xf]
        %v728 = vld [vmem:[#allocation4 + $0x3c] sm:$0xf]
        %v729 = vld [vmem:[%s8] sm:$0x1]
        %v731 = vlaneseq
        %v732 = vshrl.u32 %v731, 7
        %v733 = vsub.s32 0, %v732
        %v734 = vrot.slane %v729, %v733
        %v752 = vunpack.c.l.b16 %v713
        %v753 = vunpack.c.l.b16 %v714
        %v754 = vunpack.c.l.b16 %v715
        %v755 = vunpack.c.l.b16 %v716
        %v756 = vunpack.c.l.b16 %v717
        %v757 = vunpack.c.l.b16 %v718
        %v758 = vunpack.c.l.b16 %v719
        %v759 = vunpack.c.l.b16 %v720
        %v760 = vunpack.c.l.b16 %v721
        %v761 = vunpack.c.l.b16 %v722
        %v762 = vunpack.c.l.b16 %v723
        %v763 = vunpack.c.l.b16 %v724
        %v764 = vunpack.c.l.b16 %v725
        %v765 = vunpack.c.l.b16 %v726
        %v766 = vunpack.c.l.b16 %v727
        %v767 = vunpack.c.l.b16 %v728
        %v768 = vpack.c.b16 %v753, %v752
        %v769 = vpack.c.b16 %v755, %v754
        %v770 = vpack.c.b16 %v757, %v756
        %v771 = vpack.c.b16 %v759, %v758
        %v772 = vpack.c.b16 %v761, %v760
        %v773 = vpack.c.b16 %v763, %v762
        %v774 = vpack.c.b16 %v765, %v764
        %v775 = vpack.c.b16 %v767, %v766
        %784 = vmatprep.subr.bf16.mxu0 0
        %785 = vmatpush1.bf16.msra.mxu0 %v768
        %786 = vmatprep.subr.bf16.mxu0 0
        %787 = vmatpush1.bf16.msra.mxu0 %v769
        %788 = vmatprep.subr.bf16.mxu0 0
        %789 = vmatpush1.bf16.msra.mxu0 %v770
        %790 = vmatprep.subr.bf16.mxu0 0
        %791 = vmatpush1.bf16.msra.mxu0 %v771
        %792 = vmatprep.subr.bf16.mxu0 0
        %793 = vmatpush1.bf16.msra.mxu0 %v772
        %794 = vmatprep.subr.bf16.mxu0 0
        %795 = vmatpush1.bf16.msra.mxu0 %v773
        %796 = vmatprep.subr.bf16.mxu0 0
        %797 = vmatpush1.bf16.msra.mxu0 %v774
        %798 = vmatprep.subr.bf16.mxu0 0
        %799 = vmatpush1.bf16.msra.mxu0 %v775
        %800 = vmatprep.subr.bf16.mxu0 0
        %801 = vmatpush1.bf16.msra.mxu0 0
        %802 = vmatprep.subr.bf16.mxu0 0
        %803 = vmatpush1.bf16.msra.mxu0 0
        %804 = vmatprep.subr.bf16.mxu0 0
        %805 = vmatpush1.bf16.msra.mxu0 0
        %806 = vmatprep.subr.bf16.mxu0 0
        %807 = vmatpush1.bf16.msra.mxu0 0
        %808 = vmatprep.subr.bf16.mxu0 0
        %809 = vmatpush1.bf16.msra.mxu0 0
        %810 = vmatprep.subr.bf16.mxu0 0
        %811 = vmatpush1.bf16.msra.mxu0 0
        %812 = vmatprep.subr.bf16.mxu0 0
        %813 = vmatpush1.bf16.msra.mxu0 0
        %814 = vmatprep.subr.bf16.mxu0 0
        %815 = vmatpush1.bf16.msra.mxu0 0
        %816 = vmatprep.mubr.bf16.mxu0 0
        %817 = vmatmul.mubr.bf16.gmra.mrb[0].mxu0 %v712
        %v818 = vpop.f32.mrb[0].mxu0
        %v819 = vadd.f32 %v734, %v818
        %v820 = vpop.f32.mrb[0].mxu0
        %v821 = vpop.f32.mrb[0].mxu0
        %v822 = vadd.f32 %v734, %v821
        %v823 = vpop.f32.mrb[0].mxu0
        %824 = vdwg.mxu0
        %v825 = vtanh.pop %v819
        %v826 = vtanh.pop %v822
        %v827 = vpack.c.bf16 %v826, %v825
        %v829 = vunpack.c.l.b16 %v827
        %v830 = vunpack.c.h.b16 %v827
        %v831 = vpack.c.b16 %v829, %v829
        %v832 = vpack.c.b16 %v830, %v830
        %835 = vst [vmem:[%s364] sm:$0xf] %v831
        %836 = vst [vmem:[%s364 + $0x4] sm:$0xf] %v832
        %s837 = smul.u32 2, %s22
        %p838 = scmp.lt.s32.totalorder %s837, 7
        %s839 = scalar_select %p838, %s837, 7
        %s840 = smul.addr %s839, 4
        %s841 = scalar_lea.vmem %s9, %s840
        // Predicated region
        $region65: #{action_model_forward.1} parent=55 // pred_check
          %p842 = pneg %p234
        $region66: #{action_model_forward.1} parent=55 // pred_check_branch
          %844 = sbr.rel (%p842) target = $region68
        $region67: #{action_model_forward.1} parent=55 // pred_region
          %s845 = smul.u32 2, %s22
        $region68: #{action_model_forward.1} parent=55 // pred_fallthru
          _
      $region56: #{action_model_forward.1} parent=5 // pred_fallthru
        _
      %p846 = scmp.le.s32.totalorder 2, %s17
      // Predicated region
      $region69: #{action_model_forward.1} parent=5 // pred_check
        %p847 = pneg %p846
      $region70: #{action_model_forward.1} parent=5 // pred_check_branch
        %849 = sbr.rel (%p847) target = $region72
      $region71: #{action_model_forward.1} parent=5 // pred_region
        %s850 = ssub.s32 %s17, 2
        // Predicated region
        $region73: #{action_model_forward.1} parent=71 // pred_check
          %p851 = pneg %p240
        $region74: #{action_model_forward.1} parent=71 // pred_check_branch
          %853 = sbr.rel (%p851) target = $region76
        $region75: #{action_model_forward.1} parent=71 // pred_region
          %s854 = smul.u32 2, %s23
          %p855 = scmp.lt.s32.totalorder %s854, 7
          %s856 = scalar_select %p855, %s854, 7
          %s857 = smul.addr %s856, 4
          %s858 = scalar_lea.vmem %s9, %s857
        $region76: #{action_model_forward.1} parent=71 // pred_fallthru
          _
      $region72: #{action_model_forward.1} parent=5 // pred_fallthru
        _
    $region6: #{action_model_forward.1} parent=1 // loop_footer
      %s21 = sadd.s32 1, %s17
    $region7: #{action_model_forward.1} parent=1 // loop_footer_branch
      %16 = sbr.rel target = $region3
    $region8: #{action_model_forward.1} parent=1 // loop_exit
      _
    %859 = vsyncpa [#allocation3], 1
    %s860 = scalar_lea.sflag [#allocation3], 1
    %861 = vsyncpa %s860, 1
    %862 = vsyncpa [#allocation5], 1

</llo_original>
